<compile_context>
chip_gen: v7x
topology: tpu7x:2x2x1
jax: 0.10.0
libtpu: 0.0.40
codegen_flags: <defaults>
</compile_context>

<pallas_src>
import jax
import jax.numpy as jnp
from jax.experimental import pallas as pl
from jax.experimental.pallas import tpu as pltpu


def se3_forward_kernel(x_ref, u_ref, w1_ref, w2_ref, o_ref):
    # Two MXU contractions on the same batch tile, f32 accumulate, one store.
    acc = jnp.dot(x_ref[...], w1_ref[...], preferred_element_type=jnp.float32)
    acc += jnp.dot(u_ref[...], w2_ref[...], preferred_element_type=jnp.float32)
    o_ref[...] = acc.astype(o_ref.dtype)


def prepare_weights(W):
    """Split/transpose the Linear weight ONCE (outside the per-step call).

    W: (N, N+M) -- torch nn.Linear(N+M, N).weight layout.
    Returns (w1, w2) with w1 = W[:, :N].T of shape (N, N) and
    w2 = W[:, N:].T of shape (M, N), so that
    cat([x, u], 1) @ W.T == x @ w1 + u @ w2.
    """
    N = W.shape[0]
    w1 = jnp.asarray(W[:, :N].T)
    w2 = jnp.asarray(W[:, N:].T)
    return w1, w2


def se3_forward(x, u, w1, w2, *, block_b=8192, min_pallas_batch=1024,
                force_pallas=False):
    """Pallas equivalent of SystemEstimator3.forward([x, u]).

    x:  (B, N) float32
    u:  (B, M) float32
    w1: (N, N) float32  -- W[:, :N].T, pre-split once via prepare_weights
    w2: (M, N) float32  -- W[:, N:].T
    Returns (B, N) float32 == cat([x, u], axis=1) @ W.T
    """
    B, N = x.shape
    Bu, M = u.shape
    assert Bu == B, "x and u must share the batch dimension"
    assert w1.shape == (N, N) and w2.shape == (M, N), "weight shape mismatch"
    assert x.dtype == u.dtype == w1.dtype == w2.dtype, "dtypes must match"

    # Tiny batches (module's native use: B = 1..few): fixed Pallas launch /
    # pipeline-prologue overhead dominates; XLA's fused dot wins there.
    if not force_pallas and B < min_pallas_batch:
        return (jnp.dot(x, w1, preferred_element_type=jnp.float32)
                + jnp.dot(u, w2, preferred_element_type=jnp.float32)
                ).astype(x.dtype)

    # Batch tile: multiple of 8 (sublane), never larger than needed.
    bb = min(block_b, B)
    bb = max(8, (bb // 8) * 8)

    # Pad B up to a multiple of bb so every grid step has a uniform, pipelined
    # tile (no full-batch fallback that could blow VMEM on large B).  Padding
    # rows are zeros and only ever multiply weights, so the result is exact.
    n_blocks = pl.cdiv(B, bb)
    B_pad = n_blocks * bb
    if B_pad != B:
        pad = B_pad - B
        x = jnp.pad(x, ((0, pad), (0, 0)))
        u = jnp.pad(u, ((0, pad), (0, 0)))

    out = pl.pallas_call(
        se3_forward_kernel,
        out_shape=jax.ShapeDtypeStruct((B_pad, N), x.dtype),
        grid_spec=pltpu.PrefetchScalarGridSpec(
            num_scalar_prefetch=0,
            grid=(n_blocks,),
            in_specs=[
                pl.BlockSpec((bb, N), lambda i: (i, 0)),   # x rows, tiled
                pl.BlockSpec((bb, M), lambda i: (i, 0)),   # u rows, tiled
                pl.BlockSpec((N, N), lambda i: (0, 0)),    # w1 pinned in VMEM
                pl.BlockSpec((M, N), lambda i: (0, 0)),    # w2 pinned in VMEM
            ],
            out_specs=pl.BlockSpec((bb, N), lambda i: (i, 0)),
        ),
        compiler_params=pltpu.CompilerParams(
            dimension_semantics=("parallel",),  # batch axis -> megacore split
        ),
    )(x, u, w1, w2)

    return out if B_pad == B else out[:B]


if __name__ == "__main__":
    # Module-consistent shapes: dim_state N=32, dim_action M=8.
    N, M = 32, 8
    key = jax.random.PRNGKey(0)
    kx, ku, kw = jax.random.split(key, 3)

    # The module zero-inits W (which would make the output trivially zero);
    # use a deterministic nonzero W of the same (N, N+M) shape to exercise
    # the kernel path.
    W = jax.random.normal(kw, (N, N + M), dtype=jnp.float32) * 0.02
    w1, w2 = prepare_weights(W)  # pre-split/transposed ONCE

    def ref(x, u):
        return jnp.concatenate([x, u], axis=1) @ W.T

    # 1) Module-native tiny batch (B=8): auto-dispatch uses the plain jnp path.
    B0 = 8
    x0 = jax.random.normal(kx, (B0, N), dtype=jnp.float32)
    u0 = jax.random.normal(ku, (B0, M), dtype=jnp.float32)
    y0 = jax.block_until_ready(se3_forward(x0, u0, w1, w2))
    assert jnp.allclose(y0, ref(x0, u0), atol=1e-5, rtol=1e-5), "tiny-batch mismatch"

    # 2) Pallas path, divisible batch (multi-step pipelined grid).
    B1 = 2048
    x1 = jax.random.normal(kx, (B1, N), dtype=jnp.float32)
    u1 = jax.random.normal(ku, (B1, M), dtype=jnp.float32)
    y1 = jax.block_until_ready(
        se3_forward(x1, u1, w1, w2, block_b=512, force_pallas=True))
    assert jnp.allclose(y1, ref(x1, u1), atol=1e-5, rtol=1e-5), "pallas mismatch"

    # 3) Pallas path, non-divisible batch (exercises the padding path).
    B2 = 1000
    x2 = jax.random.normal(kx, (B2, N), dtype=jnp.float32)
    u2 = jax.random.normal(ku, (B2, M), dtype=jnp.float32)
    y2 = jax.block_until_ready(
        se3_forward(x2, u2, w1, w2, block_b=256, force_pallas=True))
    assert jnp.allclose(y2, ref(x2, u2), atol=1e-5, rtol=1e-5), "padded-batch mismatch"

    # TODO(synk): update()/reset()/predict() (SGD step, normalization, numpy I/O)
    # are host-side training utilities, not part of the forward pass.
    print("KERNEL_OK")
</pallas_src>

<mosaic_0001>
module attributes {stable_mosaic.version = 11 : i64} {
  func.func @se3_forward_kernel(%arg0: i32, %arg1: memref<512x32xf32, #tpu.memory_space<vmem>>, %arg2: memref<512x8xf32, #tpu.memory_space<vmem>>, %arg3: memref<32x32xf32, #tpu.memory_space<vmem>>, %arg4: memref<8x32xf32, #tpu.memory_space<vmem>>, %arg5: memref<512x32xf32, #tpu.memory_space<vmem>>) attributes {dimension_semantics = [#tpu.dimension_semantics<parallel>], iteration_bounds = array<i64: 4>, scalar_prefetch = 0 : i64, scratch_operands = 0 : i64, tpu.core_type = #tpu.core_type<tc>, window_params = [{transform_indices = @transform_0, window_bounds = array<i64: 512, 32>}, {transform_indices = @transform_1, window_bounds = array<i64: 512, 8>}, {pipeline_mode = #tpu.pipeline_mode<synchronous>, transform_indices = @transform_2, window_bounds = array<i64: 32, 32>}, {pipeline_mode = #tpu.pipeline_mode<synchronous>, transform_indices = @transform_3, window_bounds = array<i64: 8, 32>}, {transform_indices = @transform_4, window_bounds = array<i64: 512, 32>}]} {
    %c0 = arith.constant 0 : index
    %c0_0 = arith.constant 0 : index
    %0 = vector.load %arg1[%c0, %c0_0] : memref<512x32xf32, #tpu.memory_space<vmem>>, vector<512x32xf32>
    %c0_1 = arith.constant 0 : index
    %c0_2 = arith.constant 0 : index
    %1 = vector.load %arg3[%c0_1, %c0_2] : memref<32x32xf32, #tpu.memory_space<vmem>>, vector<32x32xf32>
    %cst = arith.constant dense<0.000000e+00> : vector<512x32xf32>
    %2 = tpu.matmul %0, %1, %cst {dimension_numbers = #tpu.dot_dimension_numbers<[1], [0], [0], [1], [0, 0, 1, 1], [], []>} : vector<512x32xf32>, vector<32x32xf32>, vector<512x32xf32> -> vector<512x32xf32>
    %c0_3 = arith.constant 0 : index
    %c0_4 = arith.constant 0 : index
    %3 = vector.load %arg2[%c0_3, %c0_4] : memref<512x8xf32, #tpu.memory_space<vmem>>, vector<512x8xf32>
    %c0_5 = arith.constant 0 : index
    %c0_6 = arith.constant 0 : index
    %4 = vector.load %arg4[%c0_5, %c0_6] : memref<8x32xf32, #tpu.memory_space<vmem>>, vector<8x32xf32>
    %cst_7 = arith.constant dense<0.000000e+00> : vector<512x32xf32>
    %5 = tpu.matmul %3, %4, %cst_7 {dimension_numbers = #tpu.dot_dimension_numbers<[1], [0], [0], [1], [0, 0, 1, 1], [], []>} : vector<512x8xf32>, vector<8x32xf32>, vector<512x32xf32> -> vector<512x32xf32>
    %6 = arith.addf %2, %5 : vector<512x32xf32>
    %c0_8 = arith.constant 0 : index
    %c0_9 = arith.constant 0 : index
    %7 = vector.load %arg5[%c0_8, %c0_9] : memref<512x32xf32, #tpu.memory_space<vmem>>, vector<512x32xf32>
    tpu.vector_store %arg5[%c0_8, %c0_9], %6 {strides = array<i32>} : memref<512x32xf32, #tpu.memory_space<vmem>>, vector<512x32xf32>,
    return
  }
  func.func @transform_0(%arg0: i32) -> (i32, i32) {
    %c0_i32 = arith.constant 0 : i32
    %c0_i32_0 = arith.constant 0 : i32
    return %arg0, %c0_i32 : i32, i32
  }
  func.func @transform_1(%arg0: i32) -> (i32, i32) {
    %c0_i32 = arith.constant 0 : i32
    %c0_i32_0 = arith.constant 0 : i32
    return %arg0, %c0_i32 : i32, i32
  }
  func.func @transform_2(%arg0: i32) -> (i32, i32) {
    %c0_i32 = arith.constant 0 : i32
    %c0_i32_0 = arith.constant 0 : i32
    %c0_i32_1 = arith.constant 0 : i32
    return %c0_i32, %c0_i32_0 : i32, i32
  }
  func.func @transform_3(%arg0: i32) -> (i32, i32) {
    %c0_i32 = arith.constant 0 : i32
    %c0_i32_0 = arith.constant 0 : i32
    %c0_i32_1 = arith.constant 0 : i32
    return %c0_i32, %c0_i32_0 : i32, i32
  }
  func.func @transform_4(%arg0: i32) -> (i32, i32) {
    %c0_i32 = arith.constant 0 : i32
    %c0_i32_0 = arith.constant 0 : i32
    return %arg0, %c0_i32 : i32, i32
  }
}

</mosaic_0001>

<llo_original>
// kernel: tpu_custom_call.1
$region0: #{tpu_custom_call.1}
  #allocation0 [shape = 'u32[]', space=smem, size = 0x4, offset = 0x4, fixed_abs, tag = 'smem constant byte address 0x4 - core index']
  #allocation1 [shape = 'u32[144,128]{1,0:T(1,128)}', space=vmem, size = 0x12000, scoped, tag = 'internal scratch']
  %s0 = inlined_call_operand.vmem [shape: f32[2048,32], index: 0, kind: input, shape index: {}]
  %s1 = inlined_call_operand.vmem [shape: f32[2048,8], index: 1, kind: input, shape index: {}]
  %s2 = inlined_call_operand.vmem [shape: f32[32,32], index: 2, kind: input, shape index: {}]
  %s3 = inlined_call_operand.vmem [shape: f32[8,32], index: 3, kind: input, shape index: {}]
  %s4 = inlined_call_operand.vmem [shape: f32[2048,32], index: 4, kind: output, shape index: {}]
  %s5 = sld [smem:[#allocation0]]
  $region49: #{tpu_custom_call.1} parent=0
    _
  %s7 = ssub.s32 1, %s5
  %s8 = scalar_select 0, %s7, %s5
  loop: start=0, step=1, limit=6
  $region2: #{tpu_custom_call.1} parent=0 // loop_pre_header
    _
  $region3: #{tpu_custom_call.1} parent=0 // loop_header
    %s10 = sphi 0, %s14
    %p11 = scmp.ge.s32.totalorder %s10, 6
    %s20 = sphi 0, %s22
    %s23 = sphi 0, %s20
    %s24 = sphi 0, %s23
    %s40 = sphi 0, %s24
    %s46 = sphi 0, %s48
    %s49 = sphi 0, %s46
    %s50 = sphi 0, %s49
    %s66 = sphi 0, %s50
    %s70 = sphi 0, %s70
    %s72 = sphi 0, %s70
    %s73 = sphi 0, %s72
    %s87 = sphi 0, %s73
    %s91 = sphi 0, %s91
    %s93 = sphi 0, %s91
    %s94 = sphi 0, %s93
    %s108 = sphi 0, %s94
    %s114 = sphi 0, %s116
    %s117 = sphi 0, %s114
    %s118 = sphi 0, %s117
    %s134 = sphi 0, %s118
  $region4: #{tpu_custom_call.1} parent=0 // loop_header_branch
    %13 = sbr.rel (%p11) target = $region8
  $region5: #{tpu_custom_call.1} parent=0 // loop_body
    %s15 = ssub.s32 %s10, 1
    %s16 = ssub.s32 %s10, 2
    %s17 = sadd.s32 %s10, 1
    %s18 = ssub.s32 %s10, %s17
    %p19 = scmp.eq.s32.totalorder %s18, 0
    %s21 = sadd.s32 %s20, 1
    %s22 = scalar_select %p19, %s20, %s21
    %p25 = pneg %p19
    %p26 = scmp.eq.s32.totalorder %s10, 3
    %p27 = por %p25, %p26
    %p28 = scmp.ne.s32.totalorder %s20, %s23
    %p29 = scmp.eq.s32.totalorder %s10, 0
    %p30 = por %p28, %p29
    %p31 = scmp.ne.s32.totalorder %s20, %s23
    %p32 = scmp.eq.s32.totalorder %s15, 3
    %p33 = por %p31, %p32
    %p34 = scmp.ne.s32.totalorder %s23, %s24
    %p35 = scmp.eq.s32.totalorder %s15, 0
    %p36 = por %p34, %p35
    %p37 = scmp.ne.s32.totalorder %s23, %s24
    %p38 = scmp.eq.s32.totalorder %s16, 3
    %p39 = por %p37, %p38
    %p41 = scmp.ne.s32.totalorder %s24, %s40
    %p42 = scmp.eq.s32.totalorder %s16, 0
    %p43 = por %p41, %p42
    %s44 = ssub.s32 %s10, %s17
    %p45 = scmp.eq.s32.totalorder %s44, 0
    %s47 = sadd.s32 %s46, 1
    %s48 = scalar_select %p45, %s46, %s47
    %p51 = pneg %p45
    %p52 = scmp.eq.s32.totalorder %s10, 3
    %p53 = por %p51, %p52
    %p54 = scmp.ne.s32.totalorder %s46, %s49
    %p55 = scmp.eq.s32.totalorder %s10, 0
    %p56 = por %p54, %p55
    %p57 = scmp.ne.s32.totalorder %s46, %s49
    %p58 = scmp.eq.s32.totalorder %s15, 3
    %p59 = por %p57, %p58
    %p60 = scmp.ne.s32.totalorder %s49, %s50
    %p61 = scmp.eq.s32.totalorder %s15, 0
    %p62 = por %p60, %p61
    %p63 = scmp.ne.s32.totalorder %s49, %s50
    %p64 = scmp.eq.s32.totalorder %s16, 3
    %p65 = por %p63, %p64
    %p67 = scmp.ne.s32.totalorder %s50, %s66
    %p68 = scmp.eq.s32.totalorder %s16, 0
    %p69 = por %p67, %p68
    %s71 = sadd.s32 %s70, 1
    %p74 = scmp.eq.s32.totalorder %s10, 3
    %p75 = scmp.ne.s32.totalorder %s70, %s72
    %p76 = scmp.eq.s32.totalorder %s10, 0
    %p77 = por %p75, %p76
    %p78 = scmp.ne.s32.totalorder %s70, %s72
    %p79 = scmp.eq.s32.totalorder %s15, 3
    %p80 = por %p78, %p79
    %p81 = scmp.ne.s32.totalorder %s72, %s73
    %p82 = scmp.eq.s32.totalorder %s15, 0
    %p83 = por %p81, %p82
    %p84 = scmp.ne.s32.totalorder %s72, %s73
    %p85 = scmp.eq.s32.totalorder %s16, 3
    %p86 = por %p84, %p85
    %p88 = scmp.ne.s32.totalorder %s73, %s87
    %p89 = scmp.eq.s32.totalorder %s16, 0
    %p90 = por %p88, %p89
    %s92 = sadd.s32 %s91, 1
    %p95 = scmp.eq.s32.totalorder %s10, 3
    %p96 = scmp.ne.s32.totalorder %s91, %s93
    %p97 = scmp.eq.s32.totalorder %s10, 0
    %p98 = por %p96, %p97
    %p99 = scmp.ne.s32.totalorder %s91, %s93
    %p100 = scmp.eq.s32.totalorder %s15, 3
    %p101 = por %p99, %p100
    %p102 = scmp.ne.s32.totalorder %s93, %s94
    %p103 = scmp.eq.s32.totalorder %s15, 0
    %p104 = por %p102, %p103
    %p105 = scmp.ne.s32.totalorder %s93, %s94
    %p106 = scmp.eq.s32.totalorder %s16, 3
    %p107 = por %p105, %p106
    %p109 = scmp.ne.s32.totalorder %s94, %s108
    %p110 = scmp.eq.s32.totalorder %s16, 0
    %p111 = por %p109, %p110
    %s112 = ssub.s32 %s10, %s17
    %p113 = scmp.eq.s32.totalorder %s112, 0
    %s115 = sadd.s32 %s114, 1
    %s116 = scalar_select %p113, %s114, %s115
    %p119 = pneg %p113
    %p120 = scmp.eq.s32.totalorder %s10, 3
    %p121 = por %p119, %p120
    %p122 = scmp.ne.s32.totalorder %s114, %s117
    %p123 = scmp.eq.s32.totalorder %s10, 0
    %p124 = por %p122, %p123
    %p125 = scmp.ne.s32.totalorder %s114, %s117
    %p126 = scmp.eq.s32.totalorder %s15, 3
    %p127 = por %p125, %p126
    %p128 = scmp.ne.s32.totalorder %s117, %s118
    %p129 = scmp.eq.s32.totalorder %s15, 0
    %p130 = por %p128, %p129
    %p131 = scmp.ne.s32.totalorder %s117, %s118
    %p132 = scmp.eq.s32.totalorder %s16, 3
    %p133 = por %p131, %p132
    %p135 = scmp.ne.s32.totalorder %s118, %s134
    %p136 = scmp.eq.s32.totalorder %s16, 0
    %p137 = por %p135, %p136
    %p138 = scmp.le.s32.totalorder 1, %s10
    %p139 = scmp.lt.s32.totalorder %s10, 5
    %p140 = pnand %p138, %p139
    %p141 = pneg %p140
    // Predicated region
    $region9: #{tpu_custom_call.1} parent=5 // pred_check
      _
    $region10: #{tpu_custom_call.1} parent=5 // pred_check_branch
      %143 = sbr.rel (%p140) target = $region12
    $region11: #{tpu_custom_call.1} parent=5 // pred_region
      %s144 = ssub.s32 %s10, 1
      // Predicated region
      $region13: #{tpu_custom_call.1} parent=11 // pred_check
        %p145 = pneg %p83
      $region14: #{tpu_custom_call.1} parent=11 // pred_check_branch
        %147 = sbr.rel (%p145) target = $region16
      $region15: #{tpu_custom_call.1} parent=11 // pred_region
        _
      $region16: #{tpu_custom_call.1} parent=11 // pred_fallthru
        _
      // Predicated region
      $region17: #{tpu_custom_call.1} parent=11 // pred_check
        %p148 = pneg %p104
      $region18: #{tpu_custom_call.1} parent=11 // pred_check_branch
        %150 = sbr.rel (%p148) target = $region20
      $region19: #{tpu_custom_call.1} parent=11 // pred_region
        _
      $region20: #{tpu_custom_call.1} parent=11 // pred_fallthru
        _
    $region12: #{tpu_custom_call.1} parent=5 // pred_fallthru
      _
    %p151 = scmp.lt.s32.totalorder %s10, 4
    // Predicated region
    $region21: #{tpu_custom_call.1} parent=5 // pred_check
      %p152 = pneg %p151
    $region22: #{tpu_custom_call.1} parent=5 // pred_check_branch
      %154 = sbr.rel (%p152) target = $region24
    $region23: #{tpu_custom_call.1} parent=5 // pred_region
      // Predicated region
      $region25: #{tpu_custom_call.1} parent=23 // pred_check
        %p155 = pneg %p30
      $region26: #{tpu_custom_call.1} parent=23 // pred_check_branch
        %157 = sbr.rel (%p155) target = $region28
      $region27: #{tpu_custom_call.1} parent=23 // pred_region
        %s158 = smul.u32 64, %s10
        %p159 = scmp.lt.s32.totalorder %s158, 255
        %s160 = scalar_select %p159, %s158, 255
        %s161 = smul.addr %s160, 8
        %s162 = scalar_lea.vmem %s0, %s161
        %s163 = smul.u32 64, %s10
      $region28: #{tpu_custom_call.1} parent=23 // pred_fallthru
        _
      // Predicated region
      $region29: #{tpu_custom_call.1} parent=23 // pred_check
        %p164 = pneg %p56
      $region30: #{tpu_custom_call.1} parent=23 // pred_check_branch
        %166 = sbr.rel (%p164) target = $region32
      $region31: #{tpu_custom_call.1} parent=23 // pred_region
        %s167 = smul.u32 64, %s10
        %p168 = scmp.lt.s32.totalorder %s167, 255
        %s169 = scalar_select %p168, %s167, 255
        %s170 = smul.addr %s169, 8
        %s171 = scalar_lea.vmem %s1, %s170
        %s172 = smul.u32 64, %s10
      $region32: #{tpu_custom_call.1} parent=23 // pred_fallthru
        _
    $region24: #{tpu_custom_call.1} parent=5 // pred_fallthru
      _
    %p173 = scmp.le.s32.totalorder 1, %s10
    %p174 = scmp.lt.s32.totalorder %s10, 5
    %p175 = pnand %p173, %p174
    %p176 = pneg %p175
    // Predicated region
    $region33: #{tpu_custom_call.1} parent=5 // pred_check
      _
    $region34: #{tpu_custom_call.1} parent=5 // pred_check_branch
      %178 = sbr.rel (%p175) target = $region36
    $region35: #{tpu_custom_call.1} parent=5 // pred_region
      %s179 = ssub.s32 %s10, 1
      %s180 = smul.u32 64, %s15
      %p181 = scmp.lt.s32.totalorder %s180, 255
      %s182 = scalar_select %p181, %s180, 255
      %s183 = smul.addr %s182, 8
      %s184 = scalar_lea.vmem %s0, %s183
      %p185 = pneg %p36
      %p186 = pneg %p33
      %s187 = smul.u32 64, %s15
      %p188 = scmp.lt.s32.totalorder %s187, 255
      %s189 = scalar_select %p188, %s187, 255
      %s190 = smul.addr %s189, 8
      %s191 = scalar_lea.vmem %s1, %s190
      %p192 = pneg %p62
      %p193 = pneg %p59
      %p194 = pneg %p83
      %p195 = pneg %p80
      %p196 = pneg %p104
      %p197 = pneg %p101
      %p198 = pneg %p130
      %p199 = pneg %p127
      %s200 = smul.u32 64, %s15
      %p201 = scmp.lt.s32.totalorder %s200, 255
      %s202 = scalar_select %p201, %s200, 255
      %s203 = smul.addr %s202, 8
      %s204 = scalar_lea.vmem %s4, %s203
      %s205 = smul.u32 64, %s15
      %p206 = scmp.lt.s32.totalorder %s205, 255
      %s207 = scalar_select %p206, %s205, 255
      %s208 = smul.addr %s207, 8
      %s209 = scalar_lea.vmem %s0, %s208
      %s210 = smul.u32 64, %s15
      %s211 = smul.u32 64, %s15
      %p212 = scmp.lt.s32.totalorder %s211, 255
      %s213 = scalar_select %p212, %s211, 255
      %s214 = smul.addr %s213, 8
      %s215 = scalar_lea.vmem %s1, %s214
      %s216 = smul.u32 64, %s15
      %s217 = smul.u32 64, %s15
      %p218 = scmp.lt.s32.totalorder %s217, 255
      %s219 = scalar_select %p218, %s217, 255
      %s220 = smul.addr %s219, 8
      %s221 = scalar_lea.vmem %s4, %s220
      %s222 = smul.u32 64, %s15
      %v223 = vld [vmem:[%s209] sm:$0xff]
      %v224 = vld [vmem:[%s209 + $0x8] sm:$0xff]
      %v225 = vld [vmem:[%s209 + $0x10] sm:$0xff]
      %v226 = vld [vmem:[%s209 + $0x18] sm:$0xff]
      %v227 = vld [vmem:[%s209 + $0x20] sm:$0xff]
      %v228 = vld [vmem:[%s209 + $0x28] sm:$0xff]
      %v229 = vld [vmem:[%s209 + $0x30] sm:$0xff]
      %v230 = vld [vmem:[%s209 + $0x38] sm:$0xff]
      %v231 = vld [vmem:[%s209 + $0x40] sm:$0xff]
      %v232 = vld [vmem:[%s209 + $0x48] sm:$0xff]
      %v233 = vld [vmem:[%s209 + $0x50] sm:$0xff]
      %v234 = vld [vmem:[%s209 + $0x58] sm:$0xff]
      %v235 = vld [vmem:[%s209 + $0x60] sm:$0xff]
      %v236 = vld [vmem:[%s209 + $0x68] sm:$0xff]
      %v237 = vld [vmem:[%s209 + $0x70] sm:$0xff]
      %v238 = vld [vmem:[%s209 + $0x78] sm:$0xff]
      %v239 = vld [vmem:[%s209 + $0x80] sm:$0xff]
      %v240 = vld [vmem:[%s209 + $0x88] sm:$0xff]
      %v241 = vld [vmem:[%s209 + $0x90] sm:$0xff]
      %v242 = vld [vmem:[%s209 + $0x98] sm:$0xff]
      %v243 = vld [vmem:[%s209 + $0xa0] sm:$0xff]
      %v244 = vld [vmem:[%s209 + $0xa8] sm:$0xff]
      %v245 = vld [vmem:[%s209 + $0xb0] sm:$0xff]
      %v246 = vld [vmem:[%s209 + $0xb8] sm:$0xff]
      %v247 = vld [vmem:[%s209 + $0xc0] sm:$0xff]
      %v248 = vld [vmem:[%s209 + $0xc8] sm:$0xff]
      %v249 = vld [vmem:[%s209 + $0xd0] sm:$0xff]
      %v250 = vld [vmem:[%s209 + $0xd8] sm:$0xff]
      %v251 = vld [vmem:[%s209 + $0xe0] sm:$0xff]
      %v252 = vld [vmem:[%s209 + $0xe8] sm:$0xff]
      %v253 = vld [vmem:[%s209 + $0xf0] sm:$0xff]
      %v254 = vld [vmem:[%s209 + $0xf8] sm:$0xff]
      %v255 = vld [vmem:[%s209 + $0x100] sm:$0xff]
      %v256 = vld [vmem:[%s209 + $0x108] sm:$0xff]
      %v257 = vld [vmem:[%s209 + $0x110] sm:$0xff]
      %v258 = vld [vmem:[%s209 + $0x118] sm:$0xff]
      %v259 = vld [vmem:[%s209 + $0x120] sm:$0xff]
      %v260 = vld [vmem:[%s209 + $0x128] sm:$0xff]
      %v261 = vld [vmem:[%s209 + $0x130] sm:$0xff]
      %v262 = vld [vmem:[%s209 + $0x138] sm:$0xff]
      %v263 = vld [vmem:[%s209 + $0x140] sm:$0xff]
      %v264 = vld [vmem:[%s209 + $0x148] sm:$0xff]
      %v265 = vld [vmem:[%s209 + $0x150] sm:$0xff]
      %v266 = vld [vmem:[%s209 + $0x158] sm:$0xff]
      %v267 = vld [vmem:[%s209 + $0x160] sm:$0xff]
      %v268 = vld [vmem:[%s209 + $0x168] sm:$0xff]
      %v269 = vld [vmem:[%s209 + $0x170] sm:$0xff]
      %v270 = vld [vmem:[%s209 + $0x178] sm:$0xff]
      %v271 = vld [vmem:[%s209 + $0x180] sm:$0xff]
      %v272 = vld [vmem:[%s209 + $0x188] sm:$0xff]
      %v273 = vld [vmem:[%s209 + $0x190] sm:$0xff]
      %v274 = vld [vmem:[%s209 + $0x198] sm:$0xff]
      %v275 = vld [vmem:[%s209 + $0x1a0] sm:$0xff]
      %v276 = vld [vmem:[%s209 + $0x1a8] sm:$0xff]
      %v277 = vld [vmem:[%s209 + $0x1b0] sm:$0xff]
      %v278 = vld [vmem:[%s209 + $0x1b8] sm:$0xff]
      %v279 = vld [vmem:[%s209 + $0x1c0] sm:$0xff]
      %v280 = vld [vmem:[%s209 + $0x1c8] sm:$0xff]
      %v281 = vld [vmem:[%s209 + $0x1d0] sm:$0xff]
      %v282 = vld [vmem:[%s209 + $0x1d8] sm:$0xff]
      %v283 = vld [vmem:[%s209 + $0x1e0] sm:$0xff]
      %v284 = vld [vmem:[%s209 + $0x1e8] sm:$0xff]
      %v285 = vld [vmem:[%s209 + $0x1f0] sm:$0xff]
      %v286 = vld [vmem:[%s209 + $0x1f8] sm:$0xff]
      %v287 = vld [vmem:[%s2] sm:$0xff]
      %v288 = vld [vmem:[%s2 + $0x8] sm:$0xff]
      %v289 = vld [vmem:[%s2 + $0x10] sm:$0xff]
      %v290 = vld [vmem:[%s2 + $0x18] sm:$0xff]
      %v291 = vld [vmem:[%s215] sm:$0xff]
      %v292 = vld [vmem:[%s215 + $0x8] sm:$0xff]
      %v293 = vld [vmem:[%s215 + $0x10] sm:$0xff]
      %v294 = vld [vmem:[%s215 + $0x18] sm:$0xff]
      %v295 = vld [vmem:[%s215 + $0x20] sm:$0xff]
      %v296 = vld [vmem:[%s215 + $0x28] sm:$0xff]
      %v297 = vld [vmem:[%s215 + $0x30] sm:$0xff]
      %v298 = vld [vmem:[%s215 + $0x38] sm:$0xff]
      %v299 = vld [vmem:[%s215 + $0x40] sm:$0xff]
      %v300 = vld [vmem:[%s215 + $0x48] sm:$0xff]
      %v301 = vld [vmem:[%s215 + $0x50] sm:$0xff]
      %v302 = vld [vmem:[%s215 + $0x58] sm:$0xff]
      %v303 = vld [vmem:[%s215 + $0x60] sm:$0xff]
      %v304 = vld [vmem:[%s215 + $0x68] sm:$0xff]
      %v305 = vld [vmem:[%s215 + $0x70] sm:$0xff]
      %v306 = vld [vmem:[%s215 + $0x78] sm:$0xff]
      %v307 = vld [vmem:[%s215 + $0x80] sm:$0xff]
      %v308 = vld [vmem:[%s215 + $0x88] sm:$0xff]
      %v309 = vld [vmem:[%s215 + $0x90] sm:$0xff]
      %v310 = vld [vmem:[%s215 + $0x98] sm:$0xff]
      %v311 = vld [vmem:[%s215 + $0xa0] sm:$0xff]
      %v312 = vld [vmem:[%s215 + $0xa8] sm:$0xff]
      %v313 = vld [vmem:[%s215 + $0xb0] sm:$0xff]
      %v314 = vld [vmem:[%s215 + $0xb8] sm:$0xff]
      %v315 = vld [vmem:[%s215 + $0xc0] sm:$0xff]
      %v316 = vld [vmem:[%s215 + $0xc8] sm:$0xff]
      %v317 = vld [vmem:[%s215 + $0xd0] sm:$0xff]
      %v318 = vld [vmem:[%s215 + $0xd8] sm:$0xff]
      %v319 = vld [vmem:[%s215 + $0xe0] sm:$0xff]
      %v320 = vld [vmem:[%s215 + $0xe8] sm:$0xff]
      %v321 = vld [vmem:[%s215 + $0xf0] sm:$0xff]
      %v322 = vld [vmem:[%s215 + $0xf8] sm:$0xff]
      %v323 = vld [vmem:[%s215 + $0x100] sm:$0xff]
      %v324 = vld [vmem:[%s215 + $0x108] sm:$0xff]
      %v325 = vld [vmem:[%s215 + $0x110] sm:$0xff]
      %v326 = vld [vmem:[%s215 + $0x118] sm:$0xff]
      %v327 = vld [vmem:[%s215 + $0x120] sm:$0xff]
      %v328 = vld [vmem:[%s215 + $0x128] sm:$0xff]
      %v329 = vld [vmem:[%s215 + $0x130] sm:$0xff]
      %v330 = vld [vmem:[%s215 + $0x138] sm:$0xff]
      %v331 = vld [vmem:[%s215 + $0x140] sm:$0xff]
      %v332 = vld [vmem:[%s215 + $0x148] sm:$0xff]
      %v333 = vld [vmem:[%s215 + $0x150] sm:$0xff]
      %v334 = vld [vmem:[%s215 + $0x158] sm:$0xff]
      %v335 = vld [vmem:[%s215 + $0x160] sm:$0xff]
      %v336 = vld [vmem:[%s215 + $0x168] sm:$0xff]
      %v337 = vld [vmem:[%s215 + $0x170] sm:$0xff]
      %v338 = vld [vmem:[%s215 + $0x178] sm:$0xff]
      %v339 = vld [vmem:[%s215 + $0x180] sm:$0xff]
      %v340 = vld [vmem:[%s215 + $0x188] sm:$0xff]
      %v341 = vld [vmem:[%s215 + $0x190] sm:$0xff]
      %v342 = vld [vmem:[%s215 + $0x198] sm:$0xff]
      %v343 = vld [vmem:[%s215 + $0x1a0] sm:$0xff]
      %v344 = vld [vmem:[%s215 + $0x1a8] sm:$0xff]
      %v345 = vld [vmem:[%s215 + $0x1b0] sm:$0xff]
      %v346 = vld [vmem:[%s215 + $0x1b8] sm:$0xff]
      %v347 = vld [vmem:[%s215 + $0x1c0] sm:$0xff]
      %v348 = vld [vmem:[%s215 + $0x1c8] sm:$0xff]
      %v349 = vld [vmem:[%s215 + $0x1d0] sm:$0xff]
      %v350 = vld [vmem:[%s215 + $0x1d8] sm:$0xff]
      %v351 = vld [vmem:[%s215 + $0x1e0] sm:$0xff]
      %v352 = vld [vmem:[%s215 + $0x1e8] sm:$0xff]
      %v353 = vld [vmem:[%s215 + $0x1f0] sm:$0xff]
      %v354 = vld [vmem:[%s215 + $0x1f8] sm:$0xff]
      %v355 = vld [vmem:[%s3] sm:$0xff]
      %vm356 = vcmask 64512
      %v358 = vsel %vm356, %v291, 0
      %v361 = vsel %vm356, %v292, 0
      %v364 = vsel %vm356, %v293, 0
      %v367 = vsel %vm356, %v294, 0
      %v370 = vsel %vm356, %v295, 0
      %v373 = vsel %vm356, %v296, 0
      %v376 = vsel %vm356, %v297, 0
      %v379 = vsel %vm356, %v298, 0
      %v382 = vsel %vm356, %v299, 0
      %v385 = vsel %vm356, %v300, 0
      %v388 = vsel %vm356, %v301, 0
      %v391 = vsel %vm356, %v302, 0
      %v394 = vsel %vm356, %v303, 0
      %v397 = vsel %vm356, %v304, 0
      %v400 = vsel %vm356, %v305, 0
      %v403 = vsel %vm356, %v306, 0
      %v406 = vsel %vm356, %v307, 0
      %v409 = vsel %vm356, %v308, 0
      %v412 = vsel %vm356, %v309, 0
      %v415 = vsel %vm356, %v310, 0
      %v418 = vsel %vm356, %v311, 0
      %v421 = vsel %vm356, %v312, 0
      %v424 = vsel %vm356, %v313, 0
      %v427 = vsel %vm356, %v314, 0
      %v430 = vsel %vm356, %v315, 0
      %v433 = vsel %vm356, %v316, 0
      %v436 = vsel %vm356, %v317, 0
      %v439 = vsel %vm356, %v318, 0
      %v442 = vsel %vm356, %v319, 0
      %v445 = vsel %vm356, %v320, 0
      %v448 = vsel %vm356, %v321, 0
      %v451 = vsel %vm356, %v322, 0
      %v454 = vsel %vm356, %v323, 0
      %v457 = vsel %vm356, %v324, 0
      %v460 = vsel %vm356, %v325, 0
      %v463 = vsel %vm356, %v326, 0
      %v466 = vsel %vm356, %v327, 0
      %v469 = vsel %vm356, %v328, 0
      %v472 = vsel %vm356, %v329, 0
      %v475 = vsel %vm356, %v330, 0
      %v478 = vsel %vm356, %v331, 0
      %v481 = vsel %vm356, %v332, 0
      %v484 = vsel %vm356, %v333, 0
      %v487 = vsel %vm356, %v334, 0
      %v490 = vsel %vm356, %v335, 0
      %v493 = vsel %vm356, %v336, 0
      %v496 = vsel %vm356, %v337, 0
      %v499 = vsel %vm356, %v338, 0
      %v502 = vsel %vm356, %v339, 0
      %v505 = vsel %vm356, %v340, 0
      %v508 = vsel %vm356, %v341, 0
      %v511 = vsel %vm356, %v342, 0
      %v514 = vsel %vm356, %v343, 0
      %v517 = vsel %vm356, %v344, 0
      %v520 = vsel %vm356, %v345, 0
      %v523 = vsel %vm356, %v346, 0
      %v526 = vsel %vm356, %v347, 0
      %v529 = vsel %vm356, %v348, 0
      %v532 = vsel %vm356, %v349, 0
      %v535 = vsel %vm356, %v350, 0
      %v538 = vsel %vm356, %v351, 0
      %v541 = vsel %vm356, %v352, 0
      %v544 = vsel %vm356, %v353, 0
      %v547 = vsel %vm356, %v354, 0
      %549 = vmatprep.subr.mxu0 0.0
      %550 = vmatpush1.msra.mxu0 %v355
      %551 = vmatprep.subr.mxu0 0.0
      %552 = vmatpush1.msra.mxu0 0.0
      %553 = vmatprep.subr.mxu0 0.0
      %554 = vmatpush1.msra.mxu0 0.0
      %555 = vmatprep.subr.mxu0 0.0
      %556 = vmatpush1.msra.mxu0 0.0
      %557 = vmatprep.subr.mxu0 0.0
      %558 = vmatpush1.msra.mxu0 0.0
      %559 = vmatprep.subr.mxu0 0.0
      %560 = vmatpush1.msra.mxu0 0.0
      %561 = vmatprep.subr.mxu0 0.0
      %562 = vmatpush1.msra.mxu0 0.0
      %563 = vmatprep.subr.mxu0 0.0
      %564 = vmatpush1.msra.mxu0 0.0
      %565 = vmatprep.subr.mxu0 0.0
      %566 = vmatpush1.msra.mxu0 0.0
      %567 = vmatprep.subr.mxu0 0.0
      %568 = vmatpush1.msra.mxu0 0.0
      %569 = vmatprep.subr.mxu0 0.0
      %570 = vmatpush1.msra.mxu0 0.0
      %571 = vmatprep.subr.mxu0 0.0
      %572 = vmatpush1.msra.mxu0 0.0
      %573 = vmatprep.subr.mxu0 0.0
      %574 = vmatpush1.msra.mxu0 0.0
      %575 = vmatprep.subr.mxu0 0.0
      %576 = vmatpush1.msra.mxu0 0.0
      %577 = vmatprep.subr.mxu0 0.0
      %578 = vmatpush1.msra.mxu0 0.0
      %579 = vmatprep.subr.mxu0 0.0
      %580 = vmatpush1.msra.mxu0 0.0
      %581 = vmatprep.subr.mxu0 0.0
      %582 = vmatpush1.msra.mxu0 0.0
      %583 = vmatprep.subr.mxu0 0.0
      %584 = vmatpush1.msra.mxu0 0.0
      %585 = vmatprep.subr.mxu0 0.0
      %586 = vmatpush1.msra.mxu0 0.0
      %587 = vmatprep.subr.mxu0 0.0
      %588 = vmatpush1.msra.mxu0 0.0
      %589 = vmatprep.subr.mxu0 0.0
      %590 = vmatpush1.msra.mxu0 0.0
      %591 = vmatprep.subr.mxu0 0.0
      %592 = vmatpush1.msra.mxu0 0.0
      %593 = vmatprep.subr.mxu0 0.0
      %594 = vmatpush1.msra.mxu0 0.0
      %595 = vmatprep.subr.mxu0 0.0
      %596 = vmatpush1.msra.mxu0 0.0
      %597 = vmatprep.subr.mxu0 0.0
      %598 = vmatpush1.msra.mxu0 0.0
      %599 = vmatprep.subr.mxu0 0.0
      %600 = vmatpush1.msra.mxu0 0.0
      %601 = vmatprep.subr.mxu0 0.0
      %602 = vmatpush1.msra.mxu0 0.0
      %603 = vmatprep.subr.mxu0 0.0
      %604 = vmatpush1.msra.mxu0 0.0
      %605 = vmatprep.subr.mxu0 0.0
      %606 = vmatpush1.msra.mxu0 0.0
      %607 = vmatprep.subr.mxu0 0.0
      %608 = vmatpush1.msra.mxu0 0.0
      %609 = vmatprep.subr.mxu0 0.0
      %610 = vmatpush1.msra.mxu0 0.0
      %611 = vmatprep.subr.mxu0 0.0
      %612 = vmatpush1.msra.mxu0 0.0
      %613 = vmatprep.mubr.f32.mxu0 0.0
      %614 = vmatmul.mubr.f32.gmra.mrb[0].mxu0 %v358
      %v615 = vpop.f32.mrb[0].mxu0
      %v616 = vadd.f32 0.0, %v615
      %v617 = vpop.f32.mrb[0].mxu0
      %618 = vmatprep.mubr.f32.mxu0 0.0
      %619 = vmatmul.mubr.f32.gmra.mrb[0].mxu0 %v361
      %v620 = vpop.f32.mrb[0].mxu0
      %v621 = vadd.f32 0.0, %v620
      %v622 = vpop.f32.mrb[0].mxu0
      %623 = vmatprep.mubr.f32.mxu0 0.0
      %624 = vmatmul.mubr.f32.gmra.mrb[0].mxu0 %v364
      %v625 = vpop.f32.mrb[0].mxu0
      %v626 = vadd.f32 0.0, %v625
      %v627 = vpop.f32.mrb[0].mxu0
      %628 = vmatprep.mubr.f32.mxu0 0.0
      %629 = vmatmul.mubr.f32.gmra.mrb[0].mxu0 %v367
      %v630 = vpop.f32.mrb[0].mxu0
      %v631 = vadd.f32 0.0, %v630
      %v632 = vpop.f32.mrb[0].mxu0
      %633 = vmatprep.mubr.f32.mxu0 0.0
      %634 = vmatmul.mubr.f32.gmra.mrb[0].mxu0 %v370
      %v635 = vpop.f32.mrb[0].mxu0
      %v636 = vadd.f32 0.0, %v635
      %v637 = vpop.f32.mrb[0].mxu0
      %638 = vmatprep.mubr.f32.mxu0 0.0
      %639 = vmatmul.mubr.f32.gmra.mrb[0].mxu0 %v373
      %v640 = vpop.f32.mrb[0].mxu0
      %v641 = vadd.f32 0.0, %v640
      %v642 = vpop.f32.mrb[0].mxu0
      %643 = vmatprep.mubr.f32.mxu0 0.0
      %644 = vmatmul.mubr.f32.gmra.mrb[0].mxu0 %v376
      %v645 = vpop.f32.mrb[0].mxu0
      %v646 = vadd.f32 0.0, %v645
      %v647 = vpop.f32.mrb[0].mxu0
      %648 = vmatprep.mubr.f32.mxu0 0.0
      %649 = vmatmul.mubr.f32.gmra.mrb[0].mxu0 %v379
      %v650 = vpop.f32.mrb[0].mxu0
      %v651 = vadd.f32 0.0, %v650
      %v652 = vpop.f32.mrb[0].mxu0
      %653 = vmatprep.mubr.f32.mxu0 0.0
      %654 = vmatmul.mubr.f32.gmra.mrb[0].mxu0 %v382
      %v655 = vpop.f32.mrb[0].mxu0
      %v656 = vadd.f32 0.0, %v655
      %v657 = vpop.f32.mrb[0].mxu0
      %658 = vmatprep.mubr.f32.mxu0 0.0
      %659 = vmatmul.mubr.f32.gmra.mrb[0].mxu0 %v385
      %v660 = vpop.f32.mrb[0].mxu0
      %v661 = vadd.f32 0.0, %v660
      %v662 = vpop.f32.mrb[0].mxu0
      %663 = vmatprep.mubr.f32.mxu0 0.0
      %664 = vmatmul.mubr.f32.gmra.mrb[0].mxu0 %v388
      %v665 = vpop.f32.mrb[0].mxu0
      %v666 = vadd.f32 0.0, %v665
      %v667 = vpop.f32.mrb[0].mxu0
      %668 = vmatprep.mubr.f32.mxu0 0.0
      %669 = vmatmul.mubr.f32.gmra.mrb[0].mxu0 %v391
      %v670 = vpop.f32.mrb[0].mxu0
      %v671 = vadd.f32 0.0, %v670
      %v672 = vpop.f32.mrb[0].mxu0
      %673 = vmatprep.mubr.f32.mxu0 0.0
      %674 = vmatmul.mubr.f32.gmra.mrb[0].mxu0 %v394
      %v675 = vpop.f32.mrb[0].mxu0
      %v676 = vadd.f32 0.0, %v675
      %v677 = vpop.f32.mrb[0].mxu0
      %678 = vmatprep.mubr.f32.mxu0 0.0
      %679 = vmatmul.mubr.f32.gmra.mrb[0].mxu0 %v397
      %v680 = vpop.f32.mrb[0].mxu0
      %v681 = vadd.f32 0.0, %v680
      %v682 = vpop.f32.mrb[0].mxu0
      %683 = vmatprep.mubr.f32.mxu0 0.0
      %684 = vmatmul.mubr.f32.gmra.mrb[0].mxu0 %v400
      %v685 = vpop.f32.mrb[0].mxu0
      %v686 = vadd.f32 0.0, %v685
      %v687 = vpop.f32.mrb[0].mxu0
      %688 = vmatprep.mubr.f32.mxu0 0.0
      %689 = vmatmul.mubr.f32.gmra.mrb[0].mxu0 %v403
      %v690 = vpop.f32.mrb[0].mxu0
      %v691 = vadd.f32 0.0, %v690
      %v692 = vpop.f32.mrb[0].mxu0
      %693 = vmatprep.mubr.f32.mxu0 0.0
      %694 = vmatmul.mubr.f32.gmra.mrb[0].mxu0 %v406
      %v695 = vpop.f32.mrb[0].mxu0
      %v696 = vadd.f32 0.0, %v695
      %v697 = vpop.f32.mrb[0].mxu0
      %698 = vmatprep.mubr.f32.mxu0 0.0
      %699 = vmatmul.mubr.f32.gmra.mrb[0].mxu0 %v409
      %v700 = vpop.f32.mrb[0].mxu0
      %v701 = vadd.f32 0.0, %v700
      %v702 = vpop.f32.mrb[0].mxu0
      %703 = vmatprep.mubr.f32.mxu0 0.0
      %704 = vmatmul.mubr.f32.gmra.mrb[0].mxu0 %v412
      %v705 = vpop.f32.mrb[0].mxu0
      %v706 = vadd.f32 0.0, %v705
      %v707 = vpop.f32.mrb[0].mxu0
      %708 = vmatprep.mubr.f32.mxu0 0.0
      %709 = vmatmul.mubr.f32.gmra.mrb[0].mxu0 %v415
      %v710 = vpop.f32.mrb[0].mxu0
      %v711 = vadd.f32 0.0, %v710
      %v712 = vpop.f32.mrb[0].mxu0
      %713 = vmatprep.mubr.f32.mxu0 0.0
      %714 = vmatmul.mubr.f32.gmra.mrb[0].mxu0 %v418
      %v715 = vpop.f32.mrb[0].mxu0
      %v716 = vadd.f32 0.0, %v715
      %v717 = vpop.f32.mrb[0].mxu0
      %718 = vmatprep.mubr.f32.mxu0 0.0
      %719 = vmatmul.mubr.f32.gmra.mrb[0].mxu0 %v421
      %v720 = vpop.f32.mrb[0].mxu0
      %v721 = vadd.f32 0.0, %v720
      %v722 = vpop.f32.mrb[0].mxu0
      %723 = vmatprep.mubr.f32.mxu0 0.0
      %724 = vmatmul.mubr.f32.gmra.mrb[0].mxu0 %v424
      %v725 = vpop.f32.mrb[0].mxu0
      %v726 = vadd.f32 0.0, %v725
      %v727 = vpop.f32.mrb[0].mxu0
      %728 = vmatprep.mubr.f32.mxu0 0.0
      %729 = vmatmul.mubr.f32.gmra.mrb[0].mxu0 %v427
      %v730 = vpop.f32.mrb[0].mxu0
      %v731 = vadd.f32 0.0, %v730
      %v732 = vpop.f32.mrb[0].mxu0
      %733 = vmatprep.mubr.f32.mxu0 0.0
      %734 = vmatmul.mubr.f32.gmra.mrb[0].mxu0 %v430
      %v735 = vpop.f32.mrb[0].mxu0
      %v736 = vadd.f32 0.0, %v735
      %v737 = vpop.f32.mrb[0].mxu0
      %738 = vmatprep.mubr.f32.mxu0 0.0
      %739 = vmatmul.mubr.f32.gmra.mrb[0].mxu0 %v433
      %v740 = vpop.f32.mrb[0].mxu0
      %v741 = vadd.f32 0.0, %v740
      %v742 = vpop.f32.mrb[0].mxu0
      %743 = vmatprep.mubr.f32.mxu0 0.0
      %744 = vmatmul.mubr.f32.gmra.mrb[0].mxu0 %v436
      %v745 = vpop.f32.mrb[0].mxu0
      %v746 = vadd.f32 0.0, %v745
      %v747 = vpop.f32.mrb[0].mxu0
      %748 = vmatprep.mubr.f32.mxu0 0.0
      %749 = vmatmul.mubr.f32.gmra.mrb[0].mxu0 %v439
      %v750 = vpop.f32.mrb[0].mxu0
      %v751 = vadd.f32 0.0, %v750
      %v752 = vpop.f32.mrb[0].mxu0
      %753 = vmatprep.mubr.f32.mxu0 0.0
      %754 = vmatmul.mubr.f32.gmra.mrb[0].mxu0 %v442
      %v755 = vpop.f32.mrb[0].mxu0
      %v756 = vadd.f32 0.0, %v755
      %v757 = vpop.f32.mrb[0].mxu0
      %758 = vmatprep.mubr.f32.mxu0 0.0
      %759 = vmatmul.mubr.f32.gmra.mrb[0].mxu0 %v445
      %v760 = vpop.f32.mrb[0].mxu0
      %v761 = vadd.f32 0.0, %v760
      %v762 = vpop.f32.mrb[0].mxu0
      %763 = vmatprep.mubr.f32.mxu0 0.0
      %764 = vmatmul.mubr.f32.gmra.mrb[0].mxu0 %v448
      %v765 = vpop.f32.mrb[0].mxu0
      %v766 = vadd.f32 0.0, %v765
      %v767 = vpop.f32.mrb[0].mxu0
      %768 = vmatprep.mubr.f32.mxu0 0.0
      %769 = vmatmul.mubr.f32.gmra.mrb[0].mxu0 %v451
      %v770 = vpop.f32.mrb[0].mxu0
      %v771 = vadd.f32 0.0, %v770
      %v772 = vpop.f32.mrb[0].mxu0
      %773 = vmatprep.mubr.f32.mxu0 0.0
      %774 = vmatmul.mubr.f32.gmra.mrb[0].mxu0 %v454
      %v775 = vpop.f32.mrb[0].mxu0
      %v776 = vadd.f32 0.0, %v775
      %v777 = vpop.f32.mrb[0].mxu0
      %778 = vmatprep.mubr.f32.mxu0 0.0
      %779 = vmatmul.mubr.f32.gmra.mrb[0].mxu0 %v457
      %v780 = vpop.f32.mrb[0].mxu0
      %v781 = vadd.f32 0.0, %v780
      %v782 = vpop.f32.mrb[0].mxu0
      %783 = vmatprep.mubr.f32.mxu0 0.0
      %784 = vmatmul.mubr.f32.gmra.mrb[0].mxu0 %v460
      %v785 = vpop.f32.mrb[0].mxu0
      %v786 = vadd.f32 0.0, %v785
      %v787 = vpop.f32.mrb[0].mxu0
      %788 = vmatprep.mubr.f32.mxu0 0.0
      %789 = vmatmul.mubr.f32.gmra.mrb[0].mxu0 %v463
      %v790 = vpop.f32.mrb[0].mxu0
      %v791 = vadd.f32 0.0, %v790
      %v792 = vpop.f32.mrb[0].mxu0
      %793 = vmatprep.mubr.f32.mxu0 0.0
      %794 = vmatmul.mubr.f32.gmra.mrb[0].mxu0 %v466
      %v795 = vpop.f32.mrb[0].mxu0
      %v796 = vadd.f32 0.0, %v795
      %v797 = vpop.f32.mrb[0].mxu0
      %798 = vmatprep.mubr.f32.mxu0 0.0
      %799 = vmatmul.mubr.f32.gmra.mrb[0].mxu0 %v469
      %v800 = vpop.f32.mrb[0].mxu0
      %v801 = vadd.f32 0.0, %v800
      %v802 = vpop.f32.mrb[0].mxu0
      %803 = vmatprep.mubr.f32.mxu0 0.0
      %804 = vmatmul.mubr.f32.gmra.mrb[0].mxu0 %v472
      %v805 = vpop.f32.mrb[0].mxu0
      %v806 = vadd.f32 0.0, %v805
      %v807 = vpop.f32.mrb[0].mxu0
      %808 = vmatprep.mubr.f32.mxu0 0.0
      %809 = vmatmul.mubr.f32.gmra.mrb[0].mxu0 %v475
      %v810 = vpop.f32.mrb[0].mxu0
      %v811 = vadd.f32 0.0, %v810
      %v812 = vpop.f32.mrb[0].mxu0
      %813 = vmatprep.mubr.f32.mxu0 0.0
      %814 = vmatmul.mubr.f32.gmra.mrb[0].mxu0 %v478
      %v815 = vpop.f32.mrb[0].mxu0
      %v816 = vadd.f32 0.0, %v815
      %v817 = vpop.f32.mrb[0].mxu0
      %818 = vmatprep.mubr.f32.mxu0 0.0
      %819 = vmatmul.mubr.f32.gmra.mrb[0].mxu0 %v481
      %v820 = vpop.f32.mrb[0].mxu0
      %v821 = vadd.f32 0.0, %v820
      %v822 = vpop.f32.mrb[0].mxu0
      %823 = vmatprep.mubr.f32.mxu0 0.0
      %824 = vmatmul.mubr.f32.gmra.mrb[0].mxu0 %v484
      %v825 = vpop.f32.mrb[0].mxu0
      %v826 = vadd.f32 0.0, %v825
      %v827 = vpop.f32.mrb[0].mxu0
      %828 = vmatprep.mubr.f32.mxu0 0.0
      %829 = vmatmul.mubr.f32.gmra.mrb[0].mxu0 %v487
      %v830 = vpop.f32.mrb[0].mxu0
      %v831 = vadd.f32 0.0, %v830
      %v832 = vpop.f32.mrb[0].mxu0
      %833 = vmatprep.mubr.f32.mxu0 0.0
      %834 = vmatmul.mubr.f32.gmra.mrb[0].mxu0 %v490
      %v835 = vpop.f32.mrb[0].mxu0
      %v836 = vadd.f32 0.0, %v835
      %v837 = vpop.f32.mrb[0].mxu0
      %838 = vmatprep.mubr.f32.mxu0 0.0
      %839 = vmatmul.mubr.f32.gmra.mrb[0].mxu0 %v493
      %v840 = vpop.f32.mrb[0].mxu0
      %v841 = vadd.f32 0.0, %v840
      %v842 = vpop.f32.mrb[0].mxu0
      %843 = vmatprep.mubr.f32.mxu0 0.0
      %844 = vmatmul.mubr.f32.gmra.mrb[0].mxu0 %v496
      %v845 = vpop.f32.mrb[0].mxu0
      %v846 = vadd.f32 0.0, %v845
      %v847 = vpop.f32.mrb[0].mxu0
      %848 = vmatprep.mubr.f32.mxu0 0.0
      %849 = vmatmul.mubr.f32.gmra.mrb[0].mxu0 %v499
      %v850 = vpop.f32.mrb[0].mxu0
      %v851 = vadd.f32 0.0, %v850
      %v852 = vpop.f32.mrb[0].mxu0
      %853 = vmatprep.mubr.f32.mxu0 0.0
      %854 = vmatmul.mubr.f32.gmra.mrb[0].mxu0 %v502
      %v855 = vpop.f32.mrb[0].mxu0
      %v856 = vadd.f32 0.0, %v855
      %v857 = vpop.f32.mrb[0].mxu0
      %858 = vmatprep.mubr.f32.mxu0 0.0
      %859 = vmatmul.mubr.f32.gmra.mrb[0].mxu0 %v505
      %v860 = vpop.f32.mrb[0].mxu0
      %v861 = vadd.f32 0.0, %v860
      %v862 = vpop.f32.mrb[0].mxu0
      %863 = vmatprep.mubr.f32.mxu0 0.0
      %864 = vmatmul.mubr.f32.gmra.mrb[0].mxu0 %v508
      %v865 = vpop.f32.mrb[0].mxu0
      %v866 = vadd.f32 0.0, %v865
      %v867 = vpop.f32.mrb[0].mxu0
      %868 = vmatprep.mubr.f32.mxu0 0.0
      %869 = vmatmul.mubr.f32.gmra.mrb[0].mxu0 %v511
      %v870 = vpop.f32.mrb[0].mxu0
      %v871 = vadd.f32 0.0, %v870
      %v872 = vpop.f32.mrb[0].mxu0
      %873 = vmatprep.mubr.f32.mxu0 0.0
      %874 = vmatmul.mubr.f32.gmra.mrb[0].mxu0 %v514
      %v875 = vpop.f32.mrb[0].mxu0
      %v876 = vadd.f32 0.0, %v875
      %v877 = vpop.f32.mrb[0].mxu0
      %878 = vmatprep.mubr.f32.mxu0 0.0
      %879 = vmatmul.mubr.f32.gmra.mrb[0].mxu0 %v517
      %v880 = vpop.f32.mrb[0].mxu0
      %v881 = vadd.f32 0.0, %v880
      %v882 = vpop.f32.mrb[0].mxu0
      %883 = vmatprep.mubr.f32.mxu0 0.0
      %884 = vmatmul.mubr.f32.gmra.mrb[0].mxu0 %v520
      %v885 = vpop.f32.mrb[0].mxu0
      %v886 = vadd.f32 0.0, %v885
      %v887 = vpop.f32.mrb[0].mxu0
      %888 = vmatprep.mubr.f32.mxu0 0.0
      %889 = vmatmul.mubr.f32.gmra.mrb[0].mxu0 %v523
      %v890 = vpop.f32.mrb[0].mxu0
      %v891 = vadd.f32 0.0, %v890
      %v892 = vpop.f32.mrb[0].mxu0
      %893 = vmatprep.mubr.f32.mxu0 0.0
      %894 = vmatmul.mubr.f32.gmra.mrb[0].mxu0 %v526
      %v895 = vpop.f32.mrb[0].mxu0
      %v896 = vadd.f32 0.0, %v895
      %v897 = vpop.f32.mrb[0].mxu0
      %898 = vmatprep.mubr.f32.mxu0 0.0
      %899 = vmatmul.mubr.f32.gmra.mrb[0].mxu0 %v529
      %v900 = vpop.f32.mrb[0].mxu0
      %v901 = vadd.f32 0.0, %v900
      %v902 = vpop.f32.mrb[0].mxu0
      %903 = vmatprep.mubr.f32.mxu0 0.0
      %904 = vmatmul.mubr.f32.gmra.mrb[0].mxu0 %v532
      %v905 = vpop.f32.mrb[0].mxu0
      %v906 = vadd.f32 0.0, %v905
      %v907 = vpop.f32.mrb[0].mxu0
      %908 = vmatprep.mubr.f32.mxu0 0.0
      %909 = vmatmul.mubr.f32.gmra.mrb[0].mxu0 %v535
      %v910 = vpop.f32.mrb[0].mxu0
      %v911 = vadd.f32 0.0, %v910
      %v912 = vpop.f32.mrb[0].mxu0
      %913 = vmatprep.mubr.f32.mxu0 0.0
      %914 = vmatmul.mubr.f32.gmra.mrb[0].mxu0 %v538
      %v915 = vpop.f32.mrb[0].mxu0
      %v916 = vadd.f32 0.0, %v915
      %v917 = vpop.f32.mrb[0].mxu0
      %918 = vmatprep.mubr.f32.mxu0 0.0
      %919 = vmatmul.mubr.f32.gmra.mrb[0].mxu0 %v541
      %v920 = vpop.f32.mrb[0].mxu0
      %v921 = vadd.f32 0.0, %v920
      %v922 = vpop.f32.mrb[0].mxu0
      %923 = vmatprep.mubr.f32.mxu0 0.0
      %924 = vmatmul.mubr.f32.gmra.mrb[0].mxu0 %v544
      %v925 = vpop.f32.mrb[0].mxu0
      %v926 = vadd.f32 0.0, %v925
      %v927 = vpop.f32.mrb[0].mxu0
      %928 = vmatprep.mubr.f32.mxu0 0.0
      %929 = vmatmul.mubr.f32.gmra.mrb[0].mxu0 %v547
      %v930 = vpop.f32.mrb[0].mxu0
      %v931 = vadd.f32 0.0, %v930
      %v932 = vpop.f32.mrb[0].mxu0
      %933 = vdwg.mxu0
      %vm934 = vcmask 261120
      %v936 = vsel %vm934, %v223, 0
      %v939 = vsel %vm934, %v224, 0
      %v942 = vsel %vm934, %v225, 0
      %v945 = vsel %vm934, %v226, 0
      %v948 = vsel %vm934, %v227, 0
      %v951 = vsel %vm934, %v228, 0
      %v954 = vsel %vm934, %v229, 0
      %v957 = vsel %vm934, %v230, 0
      %v960 = vsel %vm934, %v231, 0
      %v963 = vsel %vm934, %v232, 0
      %v966 = vsel %vm934, %v233, 0
      %v969 = vsel %vm934, %v234, 0
      %v972 = vsel %vm934, %v235, 0
      %v975 = vsel %vm934, %v236, 0
      %v978 = vsel %vm934, %v237, 0
      %v981 = vsel %vm934, %v238, 0
      %v984 = vsel %vm934, %v239, 0
      %v987 = vsel %vm934, %v240, 0
      %v990 = vsel %vm934, %v241, 0
      %v993 = vsel %vm934, %v242, 0
      %v996 = vsel %vm934, %v243, 0
      %v999 = vsel %vm934, %v244, 0
      %v1002 = vsel %vm934, %v245, 0
      %v1005 = vsel %vm934, %v246, 0
      %v1008 = vsel %vm934, %v247, 0
      %v1011 = vsel %vm934, %v248, 0
      %v1014 = vsel %vm934, %v249, 0
      %v1017 = vsel %vm934, %v250, 0
      %v1020 = vsel %vm934, %v251, 0
      %v1023 = vsel %vm934, %v252, 0
      %v1026 = vsel %vm934, %v253, 0
      %v1029 = vsel %vm934, %v254, 0
      %v1032 = vsel %vm934, %v255, 0
      %v1035 = vsel %vm934, %v256, 0
      %v1038 = vsel %vm934, %v257, 0
      %v1041 = vsel %vm934, %v258, 0
      %v1044 = vsel %vm934, %v259, 0
      %v1047 = vsel %vm934, %v260, 0
      %v1050 = vsel %vm934, %v261, 0
      %v1053 = vsel %vm934, %v262, 0
      %v1056 = vsel %vm934, %v263, 0
      %v1059 = vsel %vm934, %v264, 0
      %v1062 = vsel %vm934, %v265, 0
      %v1065 = vsel %vm934, %v266, 0
      %v1068 = vsel %vm934, %v267, 0
      %v1071 = vsel %vm934, %v268, 0
      %v1074 = vsel %vm934, %v269, 0
      %v1077 = vsel %vm934, %v270, 0
      %v1080 = vsel %vm934, %v271, 0
      %v1083 = vsel %vm934, %v272, 0
      %v1086 = vsel %vm934, %v273, 0
      %v1089 = vsel %vm934, %v274, 0
      %v1092 = vsel %vm934, %v275, 0
      %v1095 = vsel %vm934, %v276, 0
      %v1098 = vsel %vm934, %v277, 0
      %v1101 = vsel %vm934, %v278, 0
      %v1104 = vsel %vm934, %v279, 0
      %v1107 = vsel %vm934, %v280, 0
      %v1110 = vsel %vm934, %v281, 0
      %v1113 = vsel %vm934, %v282, 0
      %v1116 = vsel %vm934, %v283, 0
      %v1119 = vsel %vm934, %v284, 0
      %v1122 = vsel %vm934, %v285, 0
      %v1125 = vsel %vm934, %v286, 0
      %1127 = vmatprep.subr.mxu0 0.0
      %1128 = vmatpush1.msra.mxu0 %v287
      %1129 = vmatprep.subr.mxu0 0.0
      %1130 = vmatpush1.msra.mxu0 %v288
      %1131 = vmatprep.subr.mxu0 0.0
      %1132 = vmatpush1.msra.mxu0 %v289
      %1133 = vmatprep.subr.mxu0 0.0
      %1134 = vmatpush1.msra.mxu0 %v290
      %1135 = vmatprep.subr.mxu0 0.0
      %1136 = vmatpush1.msra.mxu0 0.0
      %1137 = vmatprep.subr.mxu0 0.0
      %1138 = vmatpush1.msra.mxu0 0.0
      %1139 = vmatprep.subr.mxu0 0.0
      %1140 = vmatpush1.msra.mxu0 0.0
      %1141 = vmatprep.subr.mxu0 0.0
      %1142 = vmatpush1.msra.mxu0 0.0
      %1143 = vmatprep.subr.mxu0 0.0
      %1144 = vmatpush1.msra.mxu0 0.0
      %1145 = vmatprep.subr.mxu0 0.0
      %1146 = vmatpush1.msra.mxu0 0.0
      %1147 = vmatprep.subr.mxu0 0.0
      %1148 = vmatpush1.msra.mxu0 0.0
      %1149 = vmatprep.subr.mxu0 0.0
      %1150 = vmatpush1.msra.mxu0 0.0
      %1151 = vmatprep.subr.mxu0 0.0
      %1152 = vmatpush1.msra.mxu0 0.0
      %1153 = vmatprep.subr.mxu0 0.0
      %1154 = vmatpush1.msra.mxu0 0.0
      %1155 = vmatprep.subr.mxu0 0.0
      %1156 = vmatpush1.msra.mxu0 0.0
      %1157 = vmatprep.subr.mxu0 0.0
      %1158 = vmatpush1.msra.mxu0 0.0
      %1159 = vmatprep.subr.mxu0 0.0
      %1160 = vmatpush1.msra.mxu0 0.0
      %1161 = vmatprep.subr.mxu0 0.0
      %1162 = vmatpush1.msra.mxu0 0.0
      %1163 = vmatprep.subr.mxu0 0.0
      %1164 = vmatpush1.msra.mxu0 0.0
      %1165 = vmatprep.subr.mxu0 0.0
      %1166 = vmatpush1.msra.mxu0 0.0
      %1167 = vmatprep.subr.mxu0 0.0
      %1168 = vmatpush1.msra.mxu0 0.0
      %1169 = vmatprep.subr.mxu0 0.0
      %1170 = vmatpush1.msra.mxu0 0.0
      %1171 = vmatprep.subr.mxu0 0.0
      %1172 = vmatpush1.msra.mxu0 0.0
      %1173 = vmatprep.subr.mxu0 0.0
      %1174 = vmatpush1.msra.mxu0 0.0
      %1175 = vmatprep.subr.mxu0 0.0
      %1176 = vmatpush1.msra.mxu0 0.0
      %1177 = vmatprep.subr.mxu0 0.0
      %1178 = vmatpush1.msra.mxu0 0.0
      %1179 = vmatprep.subr.mxu0 0.0
      %1180 = vmatpush1.msra.mxu0 0.0
      %1181 = vmatprep.subr.mxu0 0.0
      %1182 = vmatpush1.msra.mxu0 0.0
      %1183 = vmatprep.subr.mxu0 0.0
      %1184 = vmatpush1.msra.mxu0 0.0
      %1185 = vmatprep.subr.mxu0 0.0
      %1186 = vmatpush1.msra.mxu0 0.0
      %1187 = vmatprep.subr.mxu0 0.0
      %1188 = vmatpush1.msra.mxu0 0.0
      %1189 = vmatprep.subr.mxu0 0.0
      %1190 = vmatpush1.msra.mxu0 0.0
      %1191 = vmatprep.mubr.f32.mxu0 0.0
      %1192 = vmatmul.mubr.f32.gmra.mrb[0].mxu0 %v936
      %v1193 = vpop.f32.mrb[0].mxu0
      %v1194 = vadd.f32 %v616, %v1193
      %v1195 = vpop.f32.mrb[0].mxu0
      %1196 = vmatprep.mubr.f32.mxu0 0.0
      %1197 = vmatmul.mubr.f32.gmra.mrb[0].mxu0 %v939
      %v1198 = vpop.f32.mrb[0].mxu0
      %v1199 = vadd.f32 %v621, %v1198
      %v1200 = vpop.f32.mrb[0].mxu0
      %1201 = vmatprep.mubr.f32.mxu0 0.0
      %1202 = vmatmul.mubr.f32.gmra.mrb[0].mxu0 %v942
      %v1203 = vpop.f32.mrb[0].mxu0
      %v1204 = vadd.f32 %v626, %v1203
      %v1205 = vpop.f32.mrb[0].mxu0
      %1206 = vmatprep.mubr.f32.mxu0 0.0
      %1207 = vmatmul.mubr.f32.gmra.mrb[0].mxu0 %v945
      %v1208 = vpop.f32.mrb[0].mxu0
      %v1209 = vadd.f32 %v631, %v1208
      %v1210 = vpop.f32.mrb[0].mxu0
      %1211 = vmatprep.mubr.f32.mxu0 0.0
      %1212 = vmatmul.mubr.f32.gmra.mrb[0].mxu0 %v948
      %v1213 = vpop.f32.mrb[0].mxu0
      %v1214 = vadd.f32 %v636, %v1213
      %v1215 = vpop.f32.mrb[0].mxu0
      %1216 = vmatprep.mubr.f32.mxu0 0.0
      %1217 = vmatmul.mubr.f32.gmra.mrb[0].mxu0 %v951
      %v1218 = vpop.f32.mrb[0].mxu0
      %v1219 = vadd.f32 %v641, %v1218
      %v1220 = vpop.f32.mrb[0].mxu0
      %1221 = vmatprep.mubr.f32.mxu0 0.0
      %1222 = vmatmul.mubr.f32.gmra.mrb[0].mxu0 %v954
      %v1223 = vpop.f32.mrb[0].mxu0
      %v1224 = vadd.f32 %v646, %v1223
      %v1225 = vpop.f32.mrb[0].mxu0
      %1226 = vmatprep.mubr.f32.mxu0 0.0
      %1227 = vmatmul.mubr.f32.gmra.mrb[0].mxu0 %v957
      %v1228 = vpop.f32.mrb[0].mxu0
      %v1229 = vadd.f32 %v651, %v1228
      %v1230 = vpop.f32.mrb[0].mxu0
      %1231 = vmatprep.mubr.f32.mxu0 0.0
      %1232 = vmatmul.mubr.f32.gmra.mrb[0].mxu0 %v960
      %v1233 = vpop.f32.mrb[0].mxu0
      %v1234 = vadd.f32 %v656, %v1233
      %v1235 = vpop.f32.mrb[0].mxu0
      %1236 = vmatprep.mubr.f32.mxu0 0.0
      %1237 = vmatmul.mubr.f32.gmra.mrb[0].mxu0 %v963
      %v1238 = vpop.f32.mrb[0].mxu0
      %v1239 = vadd.f32 %v661, %v1238
      %v1240 = vpop.f32.mrb[0].mxu0
      %1241 = vmatprep.mubr.f32.mxu0 0.0
      %1242 = vmatmul.mubr.f32.gmra.mrb[0].mxu0 %v966
      %v1243 = vpop.f32.mrb[0].mxu0
      %v1244 = vadd.f32 %v666, %v1243
      %v1245 = vpop.f32.mrb[0].mxu0
      %1246 = vmatprep.mubr.f32.mxu0 0.0
      %1247 = vmatmul.mubr.f32.gmra.mrb[0].mxu0 %v969
      %v1248 = vpop.f32.mrb[0].mxu0
      %v1249 = vadd.f32 %v671, %v1248
      %v1250 = vpop.f32.mrb[0].mxu0
      %1251 = vmatprep.mubr.f32.mxu0 0.0
      %1252 = vmatmul.mubr.f32.gmra.mrb[0].mxu0 %v972
      %v1253 = vpop.f32.mrb[0].mxu0
      %v1254 = vadd.f32 %v676, %v1253
      %v1255 = vpop.f32.mrb[0].mxu0
      %1256 = vmatprep.mubr.f32.mxu0 0.0
      %1257 = vmatmul.mubr.f32.gmra.mrb[0].mxu0 %v975
      %v1258 = vpop.f32.mrb[0].mxu0
      %v1259 = vadd.f32 %v681, %v1258
      %v1260 = vpop.f32.mrb[0].mxu0
      %1261 = vmatprep.mubr.f32.mxu0 0.0
      %1262 = vmatmul.mubr.f32.gmra.mrb[0].mxu0 %v978
      %v1263 = vpop.f32.mrb[0].mxu0
      %v1264 = vadd.f32 %v686, %v1263
      %v1265 = vpop.f32.mrb[0].mxu0
      %1266 = vmatprep.mubr.f32.mxu0 0.0
      %1267 = vmatmul.mubr.f32.gmra.mrb[0].mxu0 %v981
      %v1268 = vpop.f32.mrb[0].mxu0
      %v1269 = vadd.f32 %v691, %v1268
      %v1270 = vpop.f32.mrb[0].mxu0
      %1271 = vmatprep.mubr.f32.mxu0 0.0
      %1272 = vmatmul.mubr.f32.gmra.mrb[0].mxu0 %v984
      %v1273 = vpop.f32.mrb[0].mxu0
      %v1274 = vadd.f32 %v696, %v1273
      %v1275 = vpop.f32.mrb[0].mxu0
      %1276 = vmatprep.mubr.f32.mxu0 0.0
      %1277 = vmatmul.mubr.f32.gmra.mrb[0].mxu0 %v987
      %v1278 = vpop.f32.mrb[0].mxu0
      %v1279 = vadd.f32 %v701, %v1278
      %v1280 = vpop.f32.mrb[0].mxu0
      %1281 = vmatprep.mubr.f32.mxu0 0.0
      %1282 = vmatmul.mubr.f32.gmra.mrb[0].mxu0 %v990
      %v1283 = vpop.f32.mrb[0].mxu0
      %v1284 = vadd.f32 %v706, %v1283
      %v1285 = vpop.f32.mrb[0].mxu0
      %1286 = vmatprep.mubr.f32.mxu0 0.0
      %1287 = vmatmul.mubr.f32.gmra.mrb[0].mxu0 %v993
      %v1288 = vpop.f32.mrb[0].mxu0
      %v1289 = vadd.f32 %v711, %v1288
      %v1290 = vpop.f32.mrb[0].mxu0
      %1291 = vmatprep.mubr.f32.mxu0 0.0
      %1292 = vmatmul.mubr.f32.gmra.mrb[0].mxu0 %v996
      %v1293 = vpop.f32.mrb[0].mxu0
      %v1294 = vadd.f32 %v716, %v1293
      %v1295 = vpop.f32.mrb[0].mxu0
      %1296 = vmatprep.mubr.f32.mxu0 0.0
      %1297 = vmatmul.mubr.f32.gmra.mrb[0].mxu0 %v999
      %v1298 = vpop.f32.mrb[0].mxu0
      %v1299 = vadd.f32 %v721, %v1298
      %v1300 = vpop.f32.mrb[0].mxu0
      %1301 = vmatprep.mubr.f32.mxu0 0.0
      %1302 = vmatmul.mubr.f32.gmra.mrb[0].mxu0 %v1002
      %v1303 = vpop.f32.mrb[0].mxu0
      %v1304 = vadd.f32 %v726, %v1303
      %v1305 = vpop.f32.mrb[0].mxu0
      %1306 = vmatprep.mubr.f32.mxu0 0.0
      %1307 = vmatmul.mubr.f32.gmra.mrb[0].mxu0 %v1005
      %v1308 = vpop.f32.mrb[0].mxu0
      %v1309 = vadd.f32 %v731, %v1308
      %v1310 = vpop.f32.mrb[0].mxu0
      %1311 = vmatprep.mubr.f32.mxu0 0.0
      %1312 = vmatmul.mubr.f32.gmra.mrb[0].mxu0 %v1008
      %v1313 = vpop.f32.mrb[0].mxu0
      %v1314 = vadd.f32 %v736, %v1313
      %v1315 = vpop.f32.mrb[0].mxu0
      %1316 = vmatprep.mubr.f32.mxu0 0.0
      %1317 = vmatmul.mubr.f32.gmra.mrb[0].mxu0 %v1011
      %v1318 = vpop.f32.mrb[0].mxu0
      %v1319 = vadd.f32 %v741, %v1318
      %v1320 = vpop.f32.mrb[0].mxu0
      %1321 = vmatprep.mubr.f32.mxu0 0.0
      %1322 = vmatmul.mubr.f32.gmra.mrb[0].mxu0 %v1014
      %v1323 = vpop.f32.mrb[0].mxu0
      %v1324 = vadd.f32 %v746, %v1323
      %v1325 = vpop.f32.mrb[0].mxu0
      %1326 = vmatprep.mubr.f32.mxu0 0.0
      %1327 = vmatmul.mubr.f32.gmra.mrb[0].mxu0 %v1017
      %v1328 = vpop.f32.mrb[0].mxu0
      %v1329 = vadd.f32 %v751, %v1328
      %v1330 = vpop.f32.mrb[0].mxu0
      %1331 = vmatprep.mubr.f32.mxu0 0.0
      %1332 = vmatmul.mubr.f32.gmra.mrb[0].mxu0 %v1020
      %v1333 = vpop.f32.mrb[0].mxu0
      %v1334 = vadd.f32 %v756, %v1333
      %v1335 = vpop.f32.mrb[0].mxu0
      %1336 = vmatprep.mubr.f32.mxu0 0.0
      %1337 = vmatmul.mubr.f32.gmra.mrb[0].mxu0 %v1023
      %v1338 = vpop.f32.mrb[0].mxu0
      %v1339 = vadd.f32 %v761, %v1338
      %v1340 = vpop.f32.mrb[0].mxu0
      %1341 = vmatprep.mubr.f32.mxu0 0.0
      %1342 = vmatmul.mubr.f32.gmra.mrb[0].mxu0 %v1026
      %v1343 = vpop.f32.mrb[0].mxu0
      %v1344 = vadd.f32 %v766, %v1343
      %v1345 = vpop.f32.mrb[0].mxu0
      %1346 = vmatprep.mubr.f32.mxu0 0.0
      %1347 = vmatmul.mubr.f32.gmra.mrb[0].mxu0 %v1029
      %v1348 = vpop.f32.mrb[0].mxu0
      %v1349 = vadd.f32 %v771, %v1348
      %v1350 = vpop.f32.mrb[0].mxu0
      %1351 = vmatprep.mubr.f32.mxu0 0.0
      %1352 = vmatmul.mubr.f32.gmra.mrb[0].mxu0 %v1032
      %v1353 = vpop.f32.mrb[0].mxu0
      %v1354 = vadd.f32 %v776, %v1353
      %v1355 = vpop.f32.mrb[0].mxu0
      %1356 = vmatprep.mubr.f32.mxu0 0.0
      %1357 = vmatmul.mubr.f32.gmra.mrb[0].mxu0 %v1035
      %v1358 = vpop.f32.mrb[0].mxu0
      %v1359 = vadd.f32 %v781, %v1358
      %v1360 = vpop.f32.mrb[0].mxu0
      %1361 = vmatprep.mubr.f32.mxu0 0.0
      %1362 = vmatmul.mubr.f32.gmra.mrb[0].mxu0 %v1038
      %v1363 = vpop.f32.mrb[0].mxu0
      %v1364 = vadd.f32 %v786, %v1363
      %v1365 = vpop.f32.mrb[0].mxu0
      %1366 = vmatprep.mubr.f32.mxu0 0.0
      %1367 = vmatmul.mubr.f32.gmra.mrb[0].mxu0 %v1041
      %v1368 = vpop.f32.mrb[0].mxu0
      %v1369 = vadd.f32 %v791, %v1368
      %v1370 = vpop.f32.mrb[0].mxu0
      %1371 = vmatprep.mubr.f32.mxu0 0.0
      %1372 = vmatmul.mubr.f32.gmra.mrb[0].mxu0 %v1044
      %v1373 = vpop.f32.mrb[0].mxu0
      %v1374 = vadd.f32 %v796, %v1373
      %v1375 = vpop.f32.mrb[0].mxu0
      %1376 = vmatprep.mubr.f32.mxu0 0.0
      %1377 = vmatmul.mubr.f32.gmra.mrb[0].mxu0 %v1047
      %v1378 = vpop.f32.mrb[0].mxu0
      %v1379 = vadd.f32 %v801, %v1378
      %v1380 = vpop.f32.mrb[0].mxu0
      %1381 = vmatprep.mubr.f32.mxu0 0.0
      %1382 = vmatmul.mubr.f32.gmra.mrb[0].mxu0 %v1050
      %v1383 = vpop.f32.mrb[0].mxu0
      %v1384 = vadd.f32 %v806, %v1383
      %v1385 = vpop.f32.mrb[0].mxu0
      %1386 = vmatprep.mubr.f32.mxu0 0.0
      %1387 = vmatmul.mubr.f32.gmra.mrb[0].mxu0 %v1053
      %v1388 = vpop.f32.mrb[0].mxu0
      %v1389 = vadd.f32 %v811, %v1388
      %v1390 = vpop.f32.mrb[0].mxu0
      %1391 = vmatprep.mubr.f32.mxu0 0.0
      %1392 = vmatmul.mubr.f32.gmra.mrb[0].mxu0 %v1056
      %v1393 = vpop.f32.mrb[0].mxu0
      %v1394 = vadd.f32 %v816, %v1393
      %v1395 = vpop.f32.mrb[0].mxu0
      %1396 = vmatprep.mubr.f32.mxu0 0.0
      %1397 = vmatmul.mubr.f32.gmra.mrb[0].mxu0 %v1059
      %v1398 = vpop.f32.mrb[0].mxu0
      %v1399 = vadd.f32 %v821, %v1398
      %v1400 = vpop.f32.mrb[0].mxu0
      %1401 = vmatprep.mubr.f32.mxu0 0.0
      %1402 = vmatmul.mubr.f32.gmra.mrb[0].mxu0 %v1062
      %v1403 = vpop.f32.mrb[0].mxu0
      %v1404 = vadd.f32 %v826, %v1403
      %v1405 = vpop.f32.mrb[0].mxu0
      %1406 = vmatprep.mubr.f32.mxu0 0.0
      %1407 = vmatmul.mubr.f32.gmra.mrb[0].mxu0 %v1065
      %v1408 = vpop.f32.mrb[0].mxu0
      %v1409 = vadd.f32 %v831, %v1408
      %v1410 = vpop.f32.mrb[0].mxu0
      %1411 = vmatprep.mubr.f32.mxu0 0.0
      %1412 = vmatmul.mubr.f32.gmra.mrb[0].mxu0 %v1068
      %v1413 = vpop.f32.mrb[0].mxu0
      %v1414 = vadd.f32 %v836, %v1413
      %v1415 = vpop.f32.mrb[0].mxu0
      %1416 = vmatprep.mubr.f32.mxu0 0.0
      %1417 = vmatmul.mubr.f32.gmra.mrb[0].mxu0 %v1071
      %v1418 = vpop.f32.mrb[0].mxu0
      %v1419 = vadd.f32 %v841, %v1418
      %v1420 = vpop.f32.mrb[0].mxu0
      %1421 = vmatprep.mubr.f32.mxu0 0.0
      %1422 = vmatmul.mubr.f32.gmra.mrb[0].mxu0 %v1074
      %v1423 = vpop.f32.mrb[0].mxu0
      %v1424 = vadd.f32 %v846, %v1423
      %v1425 = vpop.f32.mrb[0].mxu0
      %1426 = vmatprep.mubr.f32.mxu0 0.0
      %1427 = vmatmul.mubr.f32.gmra.mrb[0].mxu0 %v1077
      %v1428 = vpop.f32.mrb[0].mxu0
      %v1429 = vadd.f32 %v851, %v1428
      %v1430 = vpop.f32.mrb[0].mxu0
      %1431 = vmatprep.mubr.f32.mxu0 0.0
      %1432 = vmatmul.mubr.f32.gmra.mrb[0].mxu0 %v1080
      %v1433 = vpop.f32.mrb[0].mxu0
      %v1434 = vadd.f32 %v856, %v1433
      %v1435 = vpop.f32.mrb[0].mxu0
      %1436 = vmatprep.mubr.f32.mxu0 0.0
      %1437 = vmatmul.mubr.f32.gmra.mrb[0].mxu0 %v1083
      %v1438 = vpop.f32.mrb[0].mxu0
      %v1439 = vadd.f32 %v861, %v1438
      %v1440 = vpop.f32.mrb[0].mxu0
      %1441 = vmatprep.mubr.f32.mxu0 0.0
      %1442 = vmatmul.mubr.f32.gmra.mrb[0].mxu0 %v1086
      %v1443 = vpop.f32.mrb[0].mxu0
      %v1444 = vadd.f32 %v866, %v1443
      %v1445 = vpop.f32.mrb[0].mxu0
      %1446 = vmatprep.mubr.f32.mxu0 0.0
      %1447 = vmatmul.mubr.f32.gmra.mrb[0].mxu0 %v1089
      %v1448 = vpop.f32.mrb[0].mxu0
      %v1449 = vadd.f32 %v871, %v1448
      %v1450 = vpop.f32.mrb[0].mxu0
      %1451 = vmatprep.mubr.f32.mxu0 0.0
      %1452 = vmatmul.mubr.f32.gmra.mrb[0].mxu0 %v1092
      %v1453 = vpop.f32.mrb[0].mxu0
      %v1454 = vadd.f32 %v876, %v1453
      %v1455 = vpop.f32.mrb[0].mxu0
      %1456 = vmatprep.mubr.f32.mxu0 0.0
      %1457 = vmatmul.mubr.f32.gmra.mrb[0].mxu0 %v1095
      %v1458 = vpop.f32.mrb[0].mxu0
      %v1459 = vadd.f32 %v881, %v1458
      %v1460 = vpop.f32.mrb[0].mxu0
      %1461 = vmatprep.mubr.f32.mxu0 0.0
      %1462 = vmatmul.mubr.f32.gmra.mrb[0].mxu0 %v1098
      %v1463 = vpop.f32.mrb[0].mxu0
      %v1464 = vadd.f32 %v886, %v1463
      %v1465 = vpop.f32.mrb[0].mxu0
      %1466 = vmatprep.mubr.f32.mxu0 0.0
      %1467 = vmatmul.mubr.f32.gmra.mrb[0].mxu0 %v1101
      %v1468 = vpop.f32.mrb[0].mxu0
      %v1469 = vadd.f32 %v891, %v1468
      %v1470 = vpop.f32.mrb[0].mxu0
      %1471 = vmatprep.mubr.f32.mxu0 0.0
      %1472 = vmatmul.mubr.f32.gmra.mrb[0].mxu0 %v1104
      %v1473 = vpop.f32.mrb[0].mxu0
      %v1474 = vadd.f32 %v896, %v1473
      %v1475 = vpop.f32.mrb[0].mxu0
      %1476 = vmatprep.mubr.f32.mxu0 0.0
      %1477 = vmatmul.mubr.f32.gmra.mrb[0].mxu0 %v1107
      %v1478 = vpop.f32.mrb[0].mxu0
      %v1479 = vadd.f32 %v901, %v1478
      %v1480 = vpop.f32.mrb[0].mxu0
      %1481 = vmatprep.mubr.f32.mxu0 0.0
      %1482 = vmatmul.mubr.f32.gmra.mrb[0].mxu0 %v1110
      %v1483 = vpop.f32.mrb[0].mxu0
      %v1484 = vadd.f32 %v906, %v1483
      %v1485 = vpop.f32.mrb[0].mxu0
      %1486 = vmatprep.mubr.f32.mxu0 0.0
      %1487 = vmatmul.mubr.f32.gmra.mrb[0].mxu0 %v1113
      %v1488 = vpop.f32.mrb[0].mxu0
      %v1489 = vadd.f32 %v911, %v1488
      %v1490 = vpop.f32.mrb[0].mxu0
      %1491 = vmatprep.mubr.f32.mxu0 0.0
      %1492 = vmatmul.mubr.f32.gmra.mrb[0].mxu0 %v1116
      %v1493 = vpop.f32.mrb[0].mxu0
      %v1494 = vadd.f32 %v916, %v1493
      %v1495 = vpop.f32.mrb[0].mxu0
      %1496 = vmatprep.mubr.f32.mxu0 0.0
      %1497 = vmatmul.mubr.f32.gmra.mrb[0].mxu0 %v1119
      %v1498 = vpop.f32.mrb[0].mxu0
      %v1499 = vadd.f32 %v921, %v1498
      %v1500 = vpop.f32.mrb[0].mxu0
      %1501 = vmatprep.mubr.f32.mxu0 0.0
      %1502 = vmatmul.mubr.f32.gmra.mrb[0].mxu0 %v1122
      %v1503 = vpop.f32.mrb[0].mxu0
      %v1504 = vadd.f32 %v926, %v1503
      %v1505 = vpop.f32.mrb[0].mxu0
      %1506 = vmatprep.mubr.f32.mxu0 0.0
      %1507 = vmatmul.mubr.f32.gmra.mrb[0].mxu0 %v1125
      %v1508 = vpop.f32.mrb[0].mxu0
      %v1509 = vadd.f32 %v931, %v1508
      %v1510 = vpop.f32.mrb[0].mxu0
      %1511 = vdwg.mxu0
      %1512 = vst.msk [vmem:[%s221] sm:$0xff] %vm934, %v1194
      %1513 = vst.msk [vmem:[%s221 + $0x8] sm:$0xff] %vm934, %v1199
      %1514 = vst.msk [vmem:[%s221 + $0x10] sm:$0xff] %vm934, %v1204
      %1515 = vst.msk [vmem:[%s221 + $0x18] sm:$0xff] %vm934, %v1209
      %1516 = vst.msk [vmem:[%s221 + $0x20] sm:$0xff] %vm934, %v1214
      %1517 = vst.msk [vmem:[%s221 + $0x28] sm:$0xff] %vm934, %v1219
      %1518 = vst.msk [vmem:[%s221 + $0x30] sm:$0xff] %vm934, %v1224
      %1519 = vst.msk [vmem:[%s221 + $0x38] sm:$0xff] %vm934, %v1229
      %1520 = vst.msk [vmem:[%s221 + $0x40] sm:$0xff] %vm934, %v1234
      %1521 = vst.msk [vmem:[%s221 + $0x48] sm:$0xff] %vm934, %v1239
      %1522 = vst.msk [vmem:[%s221 + $0x50] sm:$0xff] %vm934, %v1244
      %1523 = vst.msk [vmem:[%s221 + $0x58] sm:$0xff] %vm934, %v1249
      %1524 = vst.msk [vmem:[%s221 + $0x60] sm:$0xff] %vm934, %v1254
      %1525 = vst.msk [vmem:[%s221 + $0x68] sm:$0xff] %vm934, %v1259
      %1526 = vst.msk [vmem:[%s221 + $0x70] sm:$0xff] %vm934, %v1264
      %1527 = vst.msk [vmem:[%s221 + $0x78] sm:$0xff] %vm934, %v1269
      %1528 = vst.msk [vmem:[%s221 + $0x80] sm:$0xff] %vm934, %v1274
      %1529 = vst.msk [vmem:[%s221 + $0x88] sm:$0xff] %vm934, %v1279
      %1530 = vst.msk [vmem:[%s221 + $0x90] sm:$0xff] %vm934, %v1284
      %1531 = vst.msk [vmem:[%s221 + $0x98] sm:$0xff] %vm934, %v1289
      %1532 = vst.msk [vmem:[%s221 + $0xa0] sm:$0xff] %vm934, %v1294
      %1533 = vst.msk [vmem:[%s221 + $0xa8] sm:$0xff] %vm934, %v1299
      %1534 = vst.msk [vmem:[%s221 + $0xb0] sm:$0xff] %vm934, %v1304
      %1535 = vst.msk [vmem:[%s221 + $0xb8] sm:$0xff] %vm934, %v1309
      %1536 = vst.msk [vmem:[%s221 + $0xc0] sm:$0xff] %vm934, %v1314
      %1537 = vst.msk [vmem:[%s221 + $0xc8] sm:$0xff] %vm934, %v1319
      %1538 = vst.msk [vmem:[%s221 + $0xd0] sm:$0xff] %vm934, %v1324
      %1539 = vst.msk [vmem:[%s221 + $0xd8] sm:$0xff] %vm934, %v1329
      %1540 = vst.msk [vmem:[%s221 + $0xe0] sm:$0xff] %vm934, %v1334
      %1541 = vst.msk [vmem:[%s221 + $0xe8] sm:$0xff] %vm934, %v1339
      %1542 = vst.msk [vmem:[%s221 + $0xf0] sm:$0xff] %vm934, %v1344
      %1543 = vst.msk [vmem:[%s221 + $0xf8] sm:$0xff] %vm934, %v1349
      %1544 = vst.msk [vmem:[%s221 + $0x100] sm:$0xff] %vm934, %v1354
      %1545 = vst.msk [vmem:[%s221 + $0x108] sm:$0xff] %vm934, %v1359
      %1546 = vst.msk [vmem:[%s221 + $0x110] sm:$0xff] %vm934, %v1364
      %1547 = vst.msk [vmem:[%s221 + $0x118] sm:$0xff] %vm934, %v1369
      %1548 = vst.msk [vmem:[%s221 + $0x120] sm:$0xff] %vm934, %v1374
      %1549 = vst.msk [vmem:[%s221 + $0x128] sm:$0xff] %vm934, %v1379
      %1550 = vst.msk [vmem:[%s221 + $0x130] sm:$0xff] %vm934, %v1384
      %1551 = vst.msk [vmem:[%s221 + $0x138] sm:$0xff] %vm934, %v1389
      %1552 = vst.msk [vmem:[%s221 + $0x140] sm:$0xff] %vm934, %v1394
      %1553 = vst.msk [vmem:[%s221 + $0x148] sm:$0xff] %vm934, %v1399
      %1554 = vst.msk [vmem:[%s221 + $0x150] sm:$0xff] %vm934, %v1404
      %1555 = vst.msk [vmem:[%s221 + $0x158] sm:$0xff] %vm934, %v1409
      %1556 = vst.msk [vmem:[%s221 + $0x160] sm:$0xff] %vm934, %v1414
      %1557 = vst.msk [vmem:[%s221 + $0x168] sm:$0xff] %vm934, %v1419
      %1558 = vst.msk [vmem:[%s221 + $0x170] sm:$0xff] %vm934, %v1424
      %1559 = vst.msk [vmem:[%s221 + $0x178] sm:$0xff] %vm934, %v1429
      %1560 = vst.msk [vmem:[%s221 + $0x180] sm:$0xff] %vm934, %v1434
      %1561 = vst.msk [vmem:[%s221 + $0x188] sm:$0xff] %vm934, %v1439
      %1562 = vst.msk [vmem:[%s221 + $0x190] sm:$0xff] %vm934, %v1444
      %1563 = vst.msk [vmem:[%s221 + $0x198] sm:$0xff] %vm934, %v1449
      %1564 = vst.msk [vmem:[%s221 + $0x1a0] sm:$0xff] %vm934, %v1454
      %1565 = vst.msk [vmem:[%s221 + $0x1a8] sm:$0xff] %vm934, %v1459
      %1566 = vst.msk [vmem:[%s221 + $0x1b0] sm:$0xff] %vm934, %v1464
      %1567 = vst.msk [vmem:[%s221 + $0x1b8] sm:$0xff] %vm934, %v1469
      %1568 = vst.msk [vmem:[%s221 + $0x1c0] sm:$0xff] %vm934, %v1474
      %1569 = vst.msk [vmem:[%s221 + $0x1c8] sm:$0xff] %vm934, %v1479
      %1570 = vst.msk [vmem:[%s221 + $0x1d0] sm:$0xff] %vm934, %v1484
      %1571 = vst.msk [vmem:[%s221 + $0x1d8] sm:$0xff] %vm934, %v1489
      %1572 = vst.msk [vmem:[%s221 + $0x1e0] sm:$0xff] %vm934, %v1494
      %1573 = vst.msk [vmem:[%s221 + $0x1e8] sm:$0xff] %vm934, %v1499
      %1574 = vst.msk [vmem:[%s221 + $0x1f0] sm:$0xff] %vm934, %v1504
      %1575 = vst.msk [vmem:[%s221 + $0x1f8] sm:$0xff] %vm934, %v1509
      %s1576 = smul.u32 64, %s15
      %p1577 = scmp.lt.s32.totalorder %s1576, 255
      %s1578 = scalar_select %p1577, %s1576, 255
      %s1579 = smul.addr %s1578, 8
      %s1580 = scalar_lea.vmem %s4, %s1579
      // Predicated region
      $region37: #{tpu_custom_call.1} parent=35 // pred_check
        %p1581 = pneg %p127
      $region38: #{tpu_custom_call.1} parent=35 // pred_check_branch
        %1583 = sbr.rel (%p1581) target = $region40
      $region39: #{tpu_custom_call.1} parent=35 // pred_region
        %s1584 = smul.u32 64, %s15
      $region40: #{tpu_custom_call.1} parent=35 // pred_fallthru
        _
    $region36: #{tpu_custom_call.1} parent=5 // pred_fallthru
      _
    %p1585 = scmp.le.s32.totalorder 2, %s10
    // Predicated region
    $region41: #{tpu_custom_call.1} parent=5 // pred_check
      %p1586 = pneg %p1585
    $region42: #{tpu_custom_call.1} parent=5 // pred_check_branch
      %1588 = sbr.rel (%p1586) target = $region44
    $region43: #{tpu_custom_call.1} parent=5 // pred_region
      %s1589 = ssub.s32 %s10, 2
      // Predicated region
      $region45: #{tpu_custom_call.1} parent=43 // pred_check
        %p1590 = pneg %p133
      $region46: #{tpu_custom_call.1} parent=43 // pred_check_branch
        %1592 = sbr.rel (%p1590) target = $region48
      $region47: #{tpu_custom_call.1} parent=43 // pred_region
        %s1593 = smul.u32 64, %s16
        %p1594 = scmp.lt.s32.totalorder %s1593, 255
        %s1595 = scalar_select %p1594, %s1593, 255
        %s1596 = smul.addr %s1595, 8
        %s1597 = scalar_lea.vmem %s4, %s1596
      $region48: #{tpu_custom_call.1} parent=43 // pred_fallthru
        _
    $region44: #{tpu_custom_call.1} parent=5 // pred_fallthru
      _
  $region6: #{tpu_custom_call.1} parent=0 // loop_footer
    %s14 = sadd.s32 1, %s10
  $region7: #{tpu_custom_call.1} parent=0 // loop_footer_branch
    %9 = sbr.rel target = $region3
  $region8: #{tpu_custom_call.1} parent=0 // loop_exit
    _

</llo_original>
